<compile_context>
chip_gen: v6e
topology: v6e:2x2x1
jax: 0.10.0
libtpu: 0.0.40
codegen_flags: <defaults>
</compile_context>

<pallas_src>
import functools

import jax
import jax.numpy as jnp
from jax.experimental import pallas as pl
from jax.experimental.pallas import tpu as pltpu


def _cdiv(a, b):
    return -(-a // b)


def _round_up(x, m):
    return _cdiv(x, m) * m


def _decoders_kernel(x_ref, w_ref, b_ref, o_ref):
    # x_ref : (tile_s, Din)      -- one S-tile of one batch row (resident across R)
    # w_ref : (R, Din, Dout)     -- all robots' weights, fetched once, resident
    # b_ref : (R, 1, Dout)       -- all robots' biases, fetched once, resident
    # o_ref : (R, tile_s, Dout)  -- final-layout output tile (no transpose later)
    x = x_ref[...]
    num_robots = w_ref.shape[0]
    for r in range(num_robots):  # static unroll; R is small
        acc = jnp.dot(x, w_ref[r], preferred_element_type=jnp.float32)
        o_ref[r] = (acc + b_ref[r].astype(jnp.float32)).astype(o_ref.dtype)


@functools.partial(jax.jit, static_argnames=("tile_s_target",))
def output_decoders(x, weights, biases, *, tile_s_target=512):
    """x: [B, S, Din]; weights: [R, Din, Dout]; biases: [R, 1, Dout].

    Returns [B, R, S, Dout], matching
    torch.stack([decoder(x) for decoder in decoders], dim=1).
    """
    B, S, Din = x.shape
    R, _, Dout = weights.shape
    itemsize = jnp.dtype(x.dtype).itemsize
    # Sublane packing: 8 rows for 32-bit, 16 for 16-bit, 32 for 8-bit dtypes.
    sublane = 8 if itemsize >= 4 else (16 if itemsize == 2 else 32)

    # ---- Adaptive S tiling (bounds padding waste, feeds both v7x cores). ----
    s_aligned = _round_up(S, sublane)
    tile_s = min(tile_s_target, s_aligned)
    grid_s = _cdiv(s_aligned, tile_s)
    min_total_tiles = 4                       # >=2 for v7x megacore, ~4 for pipeline
    want_s = _cdiv(min_total_tiles, max(B, 1))
    max_grid_s = max(s_aligned // sublane, 1)
    if grid_s < want_s:
        grid_s = min(want_s, max_grid_s)
    tile_s = _round_up(_cdiv(S, grid_s), sublane)

    # ---- Bound per-step VMEM footprint (v7x has only 64 MiB physical VMEM). --
    def footprint(ts):
        blocks = ts * Din + R * Din * Dout + R * Dout + R * ts * Dout
        return 2 * blocks * itemsize          # worst-case double buffering

    vmem_budget = 40 << 20
    while footprint(tile_s) > vmem_budget and tile_s > sublane:
        tile_s = max(sublane, _round_up(tile_s // 2, sublane))
    # TODO(synk): if R*Din*Dout alone exceeds the budget (huge heads), add a
    # Din (K) grid axis with an f32 VMEM accumulator instead of shrinking tile_s.

    grid_s = _cdiv(S, tile_s)
    s_pad = grid_s * tile_s

    x_in = x if s_pad == S else jnp.pad(x, ((0, 0), (0, s_pad - S), (0, 0)))

    vmem_limit = int(min(64 << 20, max(8 << 20, (footprint(tile_s) * 3) // 2)))

    out = pl.pallas_call(
        _decoders_kernel,
        out_shape=jax.ShapeDtypeStruct((B, R, s_pad, Dout), x.dtype),
        grid_spec=pltpu.PrefetchScalarGridSpec(
            num_scalar_prefetch=0,
            grid=(B, grid_s),
            in_specs=[
                # x: one (tile_s, Din) tile per (b, s); batch dim squeezed.
                pl.BlockSpec((None, tile_s, Din), lambda b, s: (b, s, 0)),
                # weights / biases: full arrays, constant index -> fetched once.
                pl.BlockSpec((R, Din, Dout), lambda b, s: (0, 0, 0)),
                pl.BlockSpec((R, 1, Dout), lambda b, s: (0, 0, 0)),
            ],
            # Write directly in the final [B, R, S, Dout] layout.
            out_specs=pl.BlockSpec((None, R, tile_s, Dout),
                                   lambda b, s: (b, 0, s, 0)),
        ),
        compiler_params=pltpu.CompilerParams(
            dimension_semantics=("parallel", "parallel"),
            vmem_limit_bytes=vmem_limit,
        ),
    )(x_in, weights, biases)

    return out if s_pad == S else out[:, :, :S, :]


def _reference(x, weights, biases):
    # Pure-JAX reference mimicking the PyTorch module:
    # per robot: x @ W_r + b_r, stacked along dim=1.
    y = jnp.einsum("bsd,rde->brse", x, weights)
    return y + biases[None, :, :, :]


def _check(num_robots, batch, seq, input_dim, output_dim, key, **kw):
    kx, kw_, kb = jax.random.split(key, 3)
    x = jax.random.normal(kx, (batch, seq, input_dim), dtype=jnp.float32)
    bound = 1.0 / (input_dim ** 0.5)
    weights = jax.random.uniform(
        kw_, (num_robots, input_dim, output_dim), minval=-bound, maxval=bound,
        dtype=jnp.float32)
    biases = jax.random.uniform(
        kb, (num_robots, 1, output_dim), minval=-bound, maxval=bound,
        dtype=jnp.float32)

    out = jax.block_until_ready(output_decoders(x, weights, biases, **kw))
    ref = _reference(x, weights, biases)
    assert out.shape == (batch, num_robots, seq, output_dim), out.shape
    assert jnp.allclose(out, ref, atol=1e-5, rtol=1e-5), "mismatch vs reference"


if __name__ == "__main__":
    key = jax.random.PRNGKey(0)
    k1, k2, k3 = jax.random.split(key, 3)

    # Small shapes consistent with the module's forward.
    _check(num_robots=3, batch=2, seq=8, input_dim=32, output_dim=32, key=k1)
    # Unaligned shapes: exercises S padding and a non-128 output width.
    _check(num_robots=3, batch=2, seq=5, input_dim=32, output_dim=20, key=k2)
    # Multi-tile S grid with padding in the last tile.
    _check(num_robots=2, batch=1, seq=40, input_dim=16, output_dim=8, key=k3,
           tile_s_target=16)

    print("KERNEL_OK")
</pallas_src>

<mosaic_0001>
module attributes {stable_mosaic.version = 11 : i64} {
  func.func @_decoders_kernel(%arg0: i32, %arg1: i32, %arg2: memref<1x8x32xf32, #tpu.memory_space<vmem>>, %arg3: memref<3x32x32xf32, #tpu.memory_space<vmem>>, %arg4: memref<3x1x32xf32, #tpu.memory_space<vmem>>, %arg5: memref<1x3x8x32xf32, #tpu.memory_space<vmem>>) attributes {dimension_semantics = [#tpu.dimension_semantics<parallel>, #tpu.dimension_semantics<parallel>], iteration_bounds = array<i64: 2, 1>, scalar_prefetch = 0 : i64, scratch_operands = 0 : i64, tpu.core_type = #tpu.core_type<tc>, window_params = [{transform_indices = @transform_0, window_bounds = array<i64: 1, 8, 32>}, {pipeline_mode = #tpu.pipeline_mode<synchronous>, transform_indices = @transform_1, window_bounds = array<i64: 3, 32, 32>}, {pipeline_mode = #tpu.pipeline_mode<synchronous>, transform_indices = @transform_2, window_bounds = array<i64: 3, 1, 32>}, {transform_indices = @transform_3, window_bounds = array<i64: 1, 3, 8, 32>}]} {
    %c0 = arith.constant 0 : index
    %c0_0 = arith.constant 0 : index
    %c0_1 = arith.constant 0 : index
    %0 = vector.load %arg2[%c0, %c0_0, %c0_1] : memref<1x8x32xf32, #tpu.memory_space<vmem>>, vector<1x8x32xf32>
    %1 = vector.shape_cast %0 : vector<1x8x32xf32> to vector<8x32xf32>
    %c0_2 = arith.constant 0 : index
    %c0_3 = arith.constant 0 : index
    %c0_4 = arith.constant 0 : index
    %2 = vector.load %arg3[%c0_2, %c0_3, %c0_4] : memref<3x32x32xf32, #tpu.memory_space<vmem>>, vector<1x32x32xf32>
    %3 = vector.shape_cast %2 : vector<1x32x32xf32> to vector<32x32xf32>
    %cst = arith.constant dense<0.000000e+00> : vector<8x32xf32>
    %4 = tpu.matmul %1, %3, %cst {dimension_numbers = #tpu.dot_dimension_numbers<[1], [0], [0], [1], [0, 0, 1, 1], [], []>} : vector<8x32xf32>, vector<32x32xf32>, vector<8x32xf32> -> vector<8x32xf32>
    %c0_5 = arith.constant 0 : index
    %c0_6 = arith.constant 0 : index
    %c0_7 = arith.constant 0 : index
    %5 = vector.load %arg4[%c0_5, %c0_6, %c0_7] : memref<3x1x32xf32, #tpu.memory_space<vmem>>, vector<1x1x32xf32>
    %6 = vector.shape_cast %5 : vector<1x1x32xf32> to vector<1x32xf32>
    %7 = vector.broadcast %6 : vector<1x32xf32> to vector<8x32xf32>
    %8 = arith.addf %4, %7 : vector<8x32xf32>
    %c0_8 = arith.constant 0 : index
    %c0_9 = arith.constant 0 : index
    %c0_10 = arith.constant 0 : index
    %c0_11 = arith.constant 0 : index
    %9 = vector.load %arg5[%c0_8, %c0_9, %c0_10, %c0_11] : memref<1x3x8x32xf32, #tpu.memory_space<vmem>>, vector<1x1x8x32xf32>
    %10 = vector.shape_cast %9 : vector<1x1x8x32xf32> to vector<8x32xf32>
    %11 = vector.shape_cast %8 : vector<8x32xf32> to vector<1x1x8x32xf32>
    tpu.vector_store %arg5[%c0_8, %c0_9, %c0_10, %c0_11], %11 {strides = array<i32>} : memref<1x3x8x32xf32, #tpu.memory_space<vmem>>, vector<1x1x8x32xf32>,
    %c1 = arith.constant 1 : index
    %c0_12 = arith.constant 0 : index
    %c0_13 = arith.constant 0 : index
    %12 = vector.load %arg3[%c1, %c0_12, %c0_13] : memref<3x32x32xf32, #tpu.memory_space<vmem>>, vector<1x32x32xf32>
    %13 = vector.shape_cast %12 : vector<1x32x32xf32> to vector<32x32xf32>
    %cst_14 = arith.constant dense<0.000000e+00> : vector<8x32xf32>
    %14 = tpu.matmul %1, %13, %cst_14 {dimension_numbers = #tpu.dot_dimension_numbers<[1], [0], [0], [1], [0, 0, 1, 1], [], []>} : vector<8x32xf32>, vector<32x32xf32>, vector<8x32xf32> -> vector<8x32xf32>
    %c1_15 = arith.constant 1 : index
    %c0_16 = arith.constant 0 : index
    %c0_17 = arith.constant 0 : index
    %15 = vector.load %arg4[%c1_15, %c0_16, %c0_17] : memref<3x1x32xf32, #tpu.memory_space<vmem>>, vector<1x1x32xf32>
    %16 = vector.shape_cast %15 : vector<1x1x32xf32> to vector<1x32xf32>
    %17 = vector.broadcast %16 : vector<1x32xf32> to vector<8x32xf32>
    %18 = arith.addf %14, %17 : vector<8x32xf32>
    %c0_18 = arith.constant 0 : index
    %c1_19 = arith.constant 1 : index
    %c0_20 = arith.constant 0 : index
    %c0_21 = arith.constant 0 : index
    %19 = vector.load %arg5[%c0_18, %c1_19, %c0_20, %c0_21] : memref<1x3x8x32xf32, #tpu.memory_space<vmem>>, vector<1x1x8x32xf32>
    %20 = vector.shape_cast %19 : vector<1x1x8x32xf32> to vector<8x32xf32>
    %21 = vector.shape_cast %18 : vector<8x32xf32> to vector<1x1x8x32xf32>
    tpu.vector_store %arg5[%c0_18, %c1_19, %c0_20, %c0_21], %21 {strides = array<i32>} : memref<1x3x8x32xf32, #tpu.memory_space<vmem>>, vector<1x1x8x32xf32>,
    %c2 = arith.constant 2 : index
    %c0_22 = arith.constant 0 : index
    %c0_23 = arith.constant 0 : index
    %22 = vector.load %arg3[%c2, %c0_22, %c0_23] : memref<3x32x32xf32, #tpu.memory_space<vmem>>, vector<1x32x32xf32>
    %23 = vector.shape_cast %22 : vector<1x32x32xf32> to vector<32x32xf32>
    %cst_24 = arith.constant dense<0.000000e+00> : vector<8x32xf32>
    %24 = tpu.matmul %1, %23, %cst_24 {dimension_numbers = #tpu.dot_dimension_numbers<[1], [0], [0], [1], [0, 0, 1, 1], [], []>} : vector<8x32xf32>, vector<32x32xf32>, vector<8x32xf32> -> vector<8x32xf32>
    %c2_25 = arith.constant 2 : index
    %c0_26 = arith.constant 0 : index
    %c0_27 = arith.constant 0 : index
    %25 = vector.load %arg4[%c2_25, %c0_26, %c0_27] : memref<3x1x32xf32, #tpu.memory_space<vmem>>, vector<1x1x32xf32>
    %26 = vector.shape_cast %25 : vector<1x1x32xf32> to vector<1x32xf32>
    %27 = vector.broadcast %26 : vector<1x32xf32> to vector<8x32xf32>
    %28 = arith.addf %24, %27 : vector<8x32xf32>
    %c0_28 = arith.constant 0 : index
    %c2_29 = arith.constant 2 : index
    %c0_30 = arith.constant 0 : index
    %c0_31 = arith.constant 0 : index
    %29 = vector.load %arg5[%c0_28, %c2_29, %c0_30, %c0_31] : memref<1x3x8x32xf32, #tpu.memory_space<vmem>>, vector<1x1x8x32xf32>
    %30 = vector.shape_cast %29 : vector<1x1x8x32xf32> to vector<8x32xf32>
    %31 = vector.shape_cast %28 : vector<8x32xf32> to vector<1x1x8x32xf32>
    tpu.vector_store %arg5[%c0_28, %c2_29, %c0_30, %c0_31], %31 {strides = array<i32>} : memref<1x3x8x32xf32, #tpu.memory_space<vmem>>, vector<1x1x8x32xf32>,
    return
  }
  func.func @transform_0(%arg0: i32, %arg1: i32) -> (i32, i32, i32) {
    %c0_i32 = arith.constant 0 : i32
    %c0_i32_0 = arith.constant 0 : i32
    return %arg0, %arg1, %c0_i32 : i32, i32, i32
  }
  func.func @transform_1(%arg0: i32, %arg1: i32) -> (i32, i32, i32) {
    %c0_i32 = arith.constant 0 : i32
    %c0_i32_0 = arith.constant 0 : i32
    %c0_i32_1 = arith.constant 0 : i32
    %c0_i32_2 = arith.constant 0 : i32
    return %c0_i32, %c0_i32_0, %c0_i32_1 : i32, i32, i32
  }
  func.func @transform_2(%arg0: i32, %arg1: i32) -> (i32, i32, i32) {
    %c0_i32 = arith.constant 0 : i32
    %c0_i32_0 = arith.constant 0 : i32
    %c0_i32_1 = arith.constant 0 : i32
    %c0_i32_2 = arith.constant 0 : i32
    return %c0_i32, %c0_i32_0, %c0_i32_1 : i32, i32, i32
  }
  func.func @transform_3(%arg0: i32, %arg1: i32) -> (i32, i32, i32, i32) {
    %c0_i32 = arith.constant 0 : i32
    %c0_i32_0 = arith.constant 0 : i32
    %c0_i32_1 = arith.constant 0 : i32
    return %arg0, %c0_i32, %arg1, %c0_i32_0 : i32, i32, i32, i32
  }
}

</mosaic_0001>

<llo_original>
// kernel: output_decoders.1
$region0: #{output_decoders.1}
  #allocation0 [shape = 'u32[]', space=smem, size = 0x4, offset = 0x4, fixed_abs, tag = 'smem constant byte address 0x4 - core index']
  #allocation1 [shape = 'u32[144,128]{1,0:T(1,128)}', space=vmem, size = 0x12000, scoped, tag = 'internal scratch']
  %s0 = inlined_call_operand.hbm [shape: f32[2,8,32], index: 0, kind: input, shape index: {}]
  %s1 = inlined_call_operand.hbm [shape: f32[3,32,32], index: 1, kind: input, shape index: {}]
  %s2 = inlined_call_operand.vmem [shape: f32[3,1,32], index: 2, kind: input, shape index: {}]
  %s3 = inlined_call_operand.hbm [shape: f32[2,3,8,32], index: 3, kind: output, shape index: {}]
  %s4 = sld [smem:[#allocation0]]
  $region53: #{output_decoders.1} parent=0
    _
  %s6 = ssub.s32 1, %s4
  %s7 = scalar_select 0, %s6, %s4
  $region1: #{output_decoders.1} parent=0
    #allocation2 [shape = 'u8[8192]{0}', space=vmem, size = 0x2000, scoped, tag = 'input window, operand 0']
    #allocation3 [shape = 's32[2]{0}', space=sflag, size = 0x8, scoped, tag = 'scoped memory for output_decoders.1']
    #allocation4 [shape = 's32[2]{0}', space=sflag, size = 0x8, scoped, tag = 'scoped memory for output_decoders.1']
    #allocation5 [shape = 'u8[49152]{0}', space=vmem, size = 0xc000, scoped, tag = 'input window, operand 1, single buffered']
    #allocation6 [shape = 's32[1]{0}', space=sflag, size = 0x4, scoped, tag = 'scoped memory for output_decoders.1']
    #allocation7 [shape = 'u8[24576]{0}', space=vmem, size = 0x6000, scoped, tag = 'output window, operand 0']
    %8 = vsyncpa [#allocation3], 0
    %s9 = scalar_lea.sflag [#allocation3], 1
    %10 = vsyncpa %s9, 0
    %11 = vsyncpa [#allocation6], 0
    %12 = vsyncpa [#allocation4], 0
    %s13 = scalar_lea.sflag [#allocation4], 1
    %14 = vsyncpa %s13, 0
    loop: start=0, step=1, limit=4
    $region2: #{output_decoders.1} parent=1 // loop_pre_header
      _
    $region3: #{output_decoders.1} parent=1 // loop_header
      %s16 = sphi 0, %s20
      %p17 = scmp.ge.s32.totalorder %s16, 4
      %s23 = sphi 0, %s35
      %s24 = sphi 0, %s31
      %s25 = sphi 0, %s23
      %s26 = sphi 0, %s24
      %s27 = sphi 0, %s25
      %s28 = sphi 0, %s26
      %s40 = sphi 0, %s42
      %s43 = sphi 0, %s40
      %s44 = sphi 0, %s43
      %s60 = sphi 0, %s44
      %s64 = sphi 0, %s64
      %s66 = sphi 0, %s64
      %s67 = sphi 0, %s66
      %s81 = sphi 0, %s67
      %s85 = sphi 0, %s85
      %s87 = sphi 0, %s85
      %s88 = sphi 0, %s87
      %s102 = sphi 0, %s88
      %s110 = sphi 0, %s112
      %s113 = sphi 0, %s110
      %s114 = sphi 0, %s113
      %s130 = sphi 0, %s114
    $region4: #{output_decoders.1} parent=1 // loop_header_branch
      %19 = sbr.rel (%p17) target = $region8
    $region5: #{output_decoders.1} parent=1 // loop_body
      %s21 = ssub.s32 %s16, 1
      %s22 = ssub.s32 %s16, 2
      %s29 = sadd.s32 1, %s24
      %p30 = scmp.ge.s32.totalorder %s29, 1
      %s31 = scalar_select %p30, 0, %s29
      %s32 = sadd.s32 1, %s23
      %s33 = scalar_select %p30, %s32, %s23
      %p34 = scmp.ge.s32.totalorder %s33, 2
      %s35 = scalar_select %p34, 0, %s33
      %s36 = ssub.s32 %s23, %s35
      %s37 = ssub.s32 %s24, %s31
      %s38 = sor.u32 %s36, %s37
      %p39 = scmp.eq.s32.totalorder %s38, 0
      %s41 = sadd.s32 %s40, 1
      %s42 = scalar_select %p39, %s40, %s41
      %p45 = pneg %p39
      %p46 = scmp.eq.s32.totalorder %s16, 1
      %p47 = por %p45, %p46
      %p48 = scmp.ne.s32.totalorder %s40, %s43
      %p49 = scmp.eq.s32.totalorder %s16, 0
      %p50 = por %p48, %p49
      %p51 = scmp.ne.s32.totalorder %s40, %s43
      %p52 = scmp.eq.s32.totalorder %s21, 1
      %p53 = por %p51, %p52
      %p54 = scmp.ne.s32.totalorder %s43, %s44
      %p55 = scmp.eq.s32.totalorder %s21, 0
      %p56 = por %p54, %p55
      %p57 = scmp.ne.s32.totalorder %s43, %s44
      %p58 = scmp.eq.s32.totalorder %s22, 1
      %p59 = por %p57, %p58
      %p61 = scmp.ne.s32.totalorder %s44, %s60
      %p62 = scmp.eq.s32.totalorder %s22, 0
      %p63 = por %p61, %p62
      %s65 = sadd.s32 %s64, 1
      %p68 = scmp.eq.s32.totalorder %s16, 1
      %p69 = scmp.ne.s32.totalorder %s64, %s66
      %p70 = scmp.eq.s32.totalorder %s16, 0
      %p71 = por %p69, %p70
      %p72 = scmp.ne.s32.totalorder %s64, %s66
      %p73 = scmp.eq.s32.totalorder %s21, 1
      %p74 = por %p72, %p73
      %p75 = scmp.ne.s32.totalorder %s66, %s67
      %p76 = scmp.eq.s32.totalorder %s21, 0
      %p77 = por %p75, %p76
      %p78 = scmp.ne.s32.totalorder %s66, %s67
      %p79 = scmp.eq.s32.totalorder %s22, 1
      %p80 = por %p78, %p79
      %p82 = scmp.ne.s32.totalorder %s67, %s81
      %p83 = scmp.eq.s32.totalorder %s22, 0
      %p84 = por %p82, %p83
      %s86 = sadd.s32 %s85, 1
      %p89 = scmp.eq.s32.totalorder %s16, 1
      %p90 = scmp.ne.s32.totalorder %s85, %s87
      %p91 = scmp.eq.s32.totalorder %s16, 0
      %p92 = por %p90, %p91
      %p93 = scmp.ne.s32.totalorder %s85, %s87
      %p94 = scmp.eq.s32.totalorder %s21, 1
      %p95 = por %p93, %p94
      %p96 = scmp.ne.s32.totalorder %s87, %s88
      %p97 = scmp.eq.s32.totalorder %s21, 0
      %p98 = por %p96, %p97
      %p99 = scmp.ne.s32.totalorder %s87, %s88
      %p100 = scmp.eq.s32.totalorder %s22, 1
      %p101 = por %p99, %p100
      %p103 = scmp.ne.s32.totalorder %s88, %s102
      %p104 = scmp.eq.s32.totalorder %s22, 0
      %p105 = por %p103, %p104
      %s106 = ssub.s32 %s23, %s35
      %s107 = ssub.s32 %s24, %s31
      %s108 = sor.u32 %s106, %s107
      %p109 = scmp.eq.s32.totalorder %s108, 0
      %s111 = sadd.s32 %s110, 1
      %s112 = scalar_select %p109, %s110, %s111
      %p115 = pneg %p109
      %p116 = scmp.eq.s32.totalorder %s16, 1
      %p117 = por %p115, %p116
      %p118 = scmp.ne.s32.totalorder %s110, %s113
      %p119 = scmp.eq.s32.totalorder %s16, 0
      %p120 = por %p118, %p119
      %p121 = scmp.ne.s32.totalorder %s110, %s113
      %p122 = scmp.eq.s32.totalorder %s21, 1
      %p123 = por %p121, %p122
      %p124 = scmp.ne.s32.totalorder %s113, %s114
      %p125 = scmp.eq.s32.totalorder %s21, 0
      %p126 = por %p124, %p125
      %p127 = scmp.ne.s32.totalorder %s113, %s114
      %p128 = scmp.eq.s32.totalorder %s22, 1
      %p129 = por %p127, %p128
      %p131 = scmp.ne.s32.totalorder %s114, %s130
      %p132 = scmp.eq.s32.totalorder %s22, 0
      %p133 = por %p131, %p132
      %p134 = scmp.le.s32.totalorder 1, %s16
      %p135 = scmp.lt.s32.totalorder %s16, 3
      %p136 = pnand %p134, %p135
      %p137 = pneg %p136
      // Predicated region
      $region9: #{output_decoders.1} parent=5 // pred_check
        _
      $region10: #{output_decoders.1} parent=5 // pred_check_branch
        %139 = sbr.rel (%p136) target = $region12
      $region11: #{output_decoders.1} parent=5 // pred_region
        %s140 = ssub.s32 %s16, 1
        // Predicated region
        $region13: #{output_decoders.1} parent=11 // pred_check
          %p141 = pneg %p77
        $region14: #{output_decoders.1} parent=11 // pred_check_branch
          %143 = sbr.rel (%p141) target = $region16
        $region15: #{output_decoders.1} parent=11 // pred_region
          %s145 = ssub.s32 1536, 1536
          %146 = vsyncadd [#allocation6], %s145
          %s147 = sshll.u32 [#allocation5], 4
          %s148 = int_to_ptr.vmem [resolvable:$true] %s147
          %153 = dma.hbm_to_vmem [thread:$0]  %s1, 1536, %s148, [#allocation6], 128, 128, 8
        $region16: #{output_decoders.1} parent=11 // pred_fallthru
          _
        // Predicated region
        $region17: #{output_decoders.1} parent=11 // pred_check
          %p154 = pneg %p98
        $region18: #{output_decoders.1} parent=11 // pred_check_branch
          %156 = sbr.rel (%p154) target = $region20
        $region19: #{output_decoders.1} parent=11 // pred_region
          _
        $region20: #{output_decoders.1} parent=11 // pred_fallthru
          _
      $region12: #{output_decoders.1} parent=5 // pred_fallthru
        _
      %p157 = scmp.lt.s32.totalorder %s16, 2
      // Predicated region
      $region21: #{output_decoders.1} parent=5 // pred_check
        %p158 = pneg %p157
      $region22: #{output_decoders.1} parent=5 // pred_check_branch
        %160 = sbr.rel (%p158) target = $region24
      $region23: #{output_decoders.1} parent=5 // pred_region
        // Predicated region
        $region25: #{output_decoders.1} parent=23 // pred_check
          %p161 = pneg %p50
        $region26: #{output_decoders.1} parent=23 // pred_check_branch
          %163 = sbr.rel (%p161) target = $region28
        $region27: #{output_decoders.1} parent=23 // pred_region
          %s164 = sand.u32 %s40, 1
          %s165 = scalar_lea.sflag [#allocation3], %s164
          %s166 = sand.u32 %s40, 1
          %s167 = smul.addr %s166, 8
          %s168 = scalar_lea.vmem [#allocation2], %s167
          %s170 = ssub.s32 128, 128
          %171 = vsyncadd %s165, %s170
          %s172 = sadd.s32 %s24, %s23
          %s173 = smul.addr %s172, 128
          %s174 = scalar_lea.hbm %s0, %s173
          %s176 = sshll.u32 %s168, 4
          %s177 = int_to_ptr.vmem [resolvable:$true] %s176
          %179 = dma.hbm_to_vmem [thread:$0]  %s174, 128, %s177, %s165
        $region28: #{output_decoders.1} parent=23 // pred_fallthru
          _
      $region24: #{output_decoders.1} parent=5 // pred_fallthru
        _
      %p180 = scmp.le.s32.totalorder 1, %s16
      %p181 = scmp.lt.s32.totalorder %s16, 3
      %p182 = pnand %p180, %p181
      %p183 = pneg %p182
      // Predicated region
      $region29: #{output_decoders.1} parent=5 // pred_check
        _
      $region30: #{output_decoders.1} parent=5 // pred_check_branch
        %185 = sbr.rel (%p182) target = $region32
      $region31: #{output_decoders.1} parent=5 // pred_region
        %s186 = ssub.s32 %s16, 1
        %s187 = sand.u32 %s43, 1
        %s188 = scalar_lea.sflag [#allocation3], %s187
        %s189 = sand.u32 %s43, 1
        %s190 = smul.addr %s189, 8
        %s191 = scalar_lea.vmem [#allocation2], %s190
        // Predicated region
        $region33: #{output_decoders.1} parent=31 // pred_check
          %p192 = pneg %p56
        $region34: #{output_decoders.1} parent=31 // pred_check_branch
          %194 = sbr.rel (%p192) target = $region36
        $region35: #{output_decoders.1} parent=31 // pred_region
          %195 = dma.done %s188, 128
        $region36: #{output_decoders.1} parent=31 // pred_fallthru
          _
        // Predicated region
        $region37: #{output_decoders.1} parent=31 // pred_check
          %p196 = pneg %p77
        $region38: #{output_decoders.1} parent=31 // pred_check_branch
          %198 = sbr.rel (%p196) target = $region40
        $region39: #{output_decoders.1} parent=31 // pred_region
          %199 = dma.done [#allocation6], 1536
        $region40: #{output_decoders.1} parent=31 // pred_fallthru
          _
        %s200 = sand.u32 %s43, 1
        %s201 = scalar_lea.sflag [#allocation3], %s200
        %s202 = sand.u32 %s43, 1
        %s203 = smul.addr %s202, 8
        %s204 = scalar_lea.vmem [#allocation2], %s203
        %p205 = pneg %p56
        %p206 = pneg %p53
        %p207 = pneg %p77
        %p208 = pneg %p74
        %p209 = pneg %p98
        %p210 = pneg %p95
        %p211 = pneg %p126
        %p212 = pneg %p123
        %s213 = sand.u32 %s113, 1
        %s214 = scalar_lea.sflag [#allocation4], %s213
        %s215 = sand.u32 %s113, 1
        %s216 = smul.addr %s215, 24
        %s217 = scalar_lea.vmem [#allocation7], %s216
        %v218 = vld [vmem:[%s191] sm:$0xff]
        %v219 = vld [vmem:[#allocation5] sm:$0xff]
        %v220 = vld [vmem:[#allocation5 + $0x8] sm:$0xff]
        %v221 = vld [vmem:[#allocation5 + $0x10] sm:$0xff]
        %v222 = vld [vmem:[#allocation5 + $0x18] sm:$0xff]
        %v223 = vld [vmem:[%s2] sm:$0x1]
        %v225 = vlaneseq
        %v226 = vshrl.u32 %v225, 7
        %v227 = vsub.s32 0, %v226
        %v228 = vrot.slane %v223, %v227
        %vm230 = vcmask 261120
        %v232 = vsel %vm230, %v218, 0
        %234 = vmatprep.subr.mxu0 0.0
        %235 = vmatpush1.msra.mxu0 0.0
        %236 = vmatprep.subr.mxu0 0.0
        %237 = vmatpush1.msra.mxu0 0.0
        %238 = vmatprep.subr.mxu0 0.0
        %239 = vmatpush1.msra.mxu0 0.0
        %240 = vmatprep.subr.mxu0 0.0
        %241 = vmatpush1.msra.mxu0 0.0
        %242 = vmatprep.subr.mxu0 0.0
        %243 = vmatpush1.msra.mxu0 0.0
        %244 = vmatprep.subr.mxu0 0.0
        %245 = vmatpush1.msra.mxu0 0.0
        %246 = vmatprep.subr.mxu0 0.0
        %247 = vmatpush1.msra.mxu0 0.0
        %248 = vmatprep.subr.mxu0 0.0
        %249 = vmatpush1.msra.mxu0 0.0
        %250 = vmatprep.subr.mxu0 0.0
        %251 = vmatpush1.msra.mxu0 0.0
        %252 = vmatprep.subr.mxu0 0.0
        %253 = vmatpush1.msra.mxu0 0.0
        %254 = vmatprep.subr.mxu0 0.0
        %255 = vmatpush1.msra.mxu0 0.0
        %256 = vmatprep.subr.mxu0 0.0
        %257 = vmatpush1.msra.mxu0 0.0
        %258 = vmatprep.subr.mxu0 0.0
        %259 = vmatpush1.msra.mxu0 %v222
        %260 = vmatprep.subr.mxu0 0.0
        %261 = vmatpush1.msra.mxu0 %v221
        %262 = vmatprep.subr.mxu0 0.0
        %263 = vmatpush1.msra.mxu0 %v220
        %264 = vmatprep.subr.mxu0 0.0
        %265 = vmatpush1.msra.mxu0 %v219
        %266 = vmatprep.subr.mxu0 0.0
        %267 = vmatpush2.msra.mxu0 0.0
        %268 = vmatprep.subr.mxu0 0.0
        %269 = vmatpush2.msra.mxu0 0.0
        %270 = vmatprep.subr.mxu0 0.0
        %271 = vmatpush2.msra.mxu0 0.0
        %272 = vmatprep.subr.mxu0 0.0
        %273 = vmatpush2.msra.mxu0 0.0
        %274 = vmatprep.subr.mxu0 0.0
        %275 = vmatpush2.msra.mxu0 0.0
        %276 = vmatprep.subr.mxu0 0.0
        %277 = vmatpush2.msra.mxu0 0.0
        %278 = vmatprep.subr.mxu0 0.0
        %279 = vmatpush2.msra.mxu0 0.0
        %280 = vmatprep.subr.mxu0 0.0
        %281 = vmatpush2.msra.mxu0 0.0
        %282 = vmatprep.subr.mxu0 0.0
        %283 = vmatpush2.msra.mxu0 0.0
        %284 = vmatprep.subr.mxu0 0.0
        %285 = vmatpush2.msra.mxu0 0.0
        %286 = vmatprep.subr.mxu0 0.0
        %287 = vmatpush2.msra.mxu0 0.0
        %288 = vmatprep.subr.mxu0 0.0
        %289 = vmatpush2.msra.mxu0 0.0
        %290 = vmatprep.subr.mxu0 0.0
        %291 = vmatpush2.msra.mxu0 0.0
        %292 = vmatprep.subr.mxu0 0.0
        %293 = vmatpush2.msra.mxu0 0.0
        %294 = vmatprep.subr.mxu0 0.0
        %295 = vmatpush2.msra.mxu0 0.0
        %296 = vmatprep.subr.mxu0 0.0
        %297 = vmatpush2.msra.mxu0 0.0
        %298 = vmatprep.mubr.f32.mxu0 0.0
        %299 = vmatmul.mubr.f32.gmra.mxu0 %v232
        %v300 = vpop.f32.mrf.mxu0
        %v301 = vadd.f32 %v228, %v300
        %v302 = vpop.f32.mrf.mxu0
        %303 = vdwg.mxu0
        %304 = vst.msk [vmem:[%s217] sm:$0xff] %vm230, %v301
        %s305 = scalar_lea.vmem [#allocation5], 32
        %v306 = vld [vmem:[%s305] sm:$0xff]
        %v307 = vld [vmem:[%s305 + $0x8] sm:$0xff]
        %v308 = vld [vmem:[%s305 + $0x10] sm:$0xff]
        %v309 = vld [vmem:[%s305 + $0x18] sm:$0xff]
        %s310 = scalar_lea.vmem %s2, 1
        %v311 = vld [vmem:[%s310] sm:$0x1]
        %v313 = vlaneseq
        %v314 = vshrl.u32 %v313, 7
        %v315 = vsub.s32 0, %v314
        %v316 = vrot.slane %v311, %v315
        %318 = vmatprep.subr.mxu0 0.0
        %319 = vmatpush1.msra.mxu0 0.0
        %320 = vmatprep.subr.mxu0 0.0
        %321 = vmatpush1.msra.mxu0 0.0
        %322 = vmatprep.subr.mxu0 0.0
        %323 = vmatpush1.msra.mxu0 0.0
        %324 = vmatprep.subr.mxu0 0.0
        %325 = vmatpush1.msra.mxu0 0.0
        %326 = vmatprep.subr.mxu0 0.0
        %327 = vmatpush1.msra.mxu0 0.0
        %328 = vmatprep.subr.mxu0 0.0
        %329 = vmatpush1.msra.mxu0 0.0
        %330 = vmatprep.subr.mxu0 0.0
        %331 = vmatpush1.msra.mxu0 0.0
        %332 = vmatprep.subr.mxu0 0.0
        %333 = vmatpush1.msra.mxu0 0.0
        %334 = vmatprep.subr.mxu0 0.0
        %335 = vmatpush1.msra.mxu0 0.0
        %336 = vmatprep.subr.mxu0 0.0
        %337 = vmatpush1.msra.mxu0 0.0
        %338 = vmatprep.subr.mxu0 0.0
        %339 = vmatpush1.msra.mxu0 0.0
        %340 = vmatprep.subr.mxu0 0.0
        %341 = vmatpush1.msra.mxu0 0.0
        %342 = vmatprep.subr.mxu0 0.0
        %343 = vmatpush1.msra.mxu0 %v309
        %344 = vmatprep.subr.mxu0 0.0
        %345 = vmatpush1.msra.mxu0 %v308
        %346 = vmatprep.subr.mxu0 0.0
        %347 = vmatpush1.msra.mxu0 %v307
        %348 = vmatprep.subr.mxu0 0.0
        %349 = vmatpush1.msra.mxu0 %v306
        %350 = vmatprep.subr.mxu0 0.0
        %351 = vmatpush2.msra.mxu0 0.0
        %352 = vmatprep.subr.mxu0 0.0
        %353 = vmatpush2.msra.mxu0 0.0
        %354 = vmatprep.subr.mxu0 0.0
        %355 = vmatpush2.msra.mxu0 0.0
        %356 = vmatprep.subr.mxu0 0.0
        %357 = vmatpush2.msra.mxu0 0.0
        %358 = vmatprep.subr.mxu0 0.0
        %359 = vmatpush2.msra.mxu0 0.0
        %360 = vmatprep.subr.mxu0 0.0
        %361 = vmatpush2.msra.mxu0 0.0
        %362 = vmatprep.subr.mxu0 0.0
        %363 = vmatpush2.msra.mxu0 0.0
        %364 = vmatprep.subr.mxu0 0.0
        %365 = vmatpush2.msra.mxu0 0.0
        %366 = vmatprep.subr.mxu0 0.0
        %367 = vmatpush2.msra.mxu0 0.0
        %368 = vmatprep.subr.mxu0 0.0
        %369 = vmatpush2.msra.mxu0 0.0
        %370 = vmatprep.subr.mxu0 0.0
        %371 = vmatpush2.msra.mxu0 0.0
        %372 = vmatprep.subr.mxu0 0.0
        %373 = vmatpush2.msra.mxu0 0.0
        %374 = vmatprep.subr.mxu0 0.0
        %375 = vmatpush2.msra.mxu0 0.0
        %376 = vmatprep.subr.mxu0 0.0
        %377 = vmatpush2.msra.mxu0 0.0
        %378 = vmatprep.subr.mxu0 0.0
        %379 = vmatpush2.msra.mxu0 0.0
        %380 = vmatprep.subr.mxu0 0.0
        %381 = vmatpush2.msra.mxu0 0.0
        %382 = vmatprep.mubr.f32.mxu0 0.0
        %383 = vmatmul.mubr.f32.gmra.mxu0 %v232
        %v384 = vpop.f32.mrf.mxu0
        %v385 = vadd.f32 %v316, %v384
        %v386 = vpop.f32.mrf.mxu0
        %387 = vdwg.mxu0
        %s388 = scalar_lea.vmem %s217, 8 [#allocation7]
        %389 = vst.msk [vmem:[%s388] sm:$0xff] %vm230, %v385
        %s390 = scalar_lea.vmem [#allocation5], 64
        %v391 = vld [vmem:[%s390] sm:$0xff]
        %v392 = vld [vmem:[%s390 + $0x8] sm:$0xff]
        %v393 = vld [vmem:[%s390 + $0x10] sm:$0xff]
        %v394 = vld [vmem:[%s390 + $0x18] sm:$0xff]
        %s395 = scalar_lea.vmem %s2, 2
        %v396 = vld [vmem:[%s395] sm:$0x1]
        %v398 = vlaneseq
        %v399 = vshrl.u32 %v398, 7
        %v400 = vsub.s32 0, %v399
        %v401 = vrot.slane %v396, %v400
        %403 = vmatprep.subr.mxu0 0.0
        %404 = vmatpush1.msra.mxu0 0.0
        %405 = vmatprep.subr.mxu0 0.0
        %406 = vmatpush1.msra.mxu0 0.0
        %407 = vmatprep.subr.mxu0 0.0
        %408 = vmatpush1.msra.mxu0 0.0
        %409 = vmatprep.subr.mxu0 0.0
        %410 = vmatpush1.msra.mxu0 0.0
        %411 = vmatprep.subr.mxu0 0.0
        %412 = vmatpush1.msra.mxu0 0.0
        %413 = vmatprep.subr.mxu0 0.0
        %414 = vmatpush1.msra.mxu0 0.0
        %415 = vmatprep.subr.mxu0 0.0
        %416 = vmatpush1.msra.mxu0 0.0
        %417 = vmatprep.subr.mxu0 0.0
        %418 = vmatpush1.msra.mxu0 0.0
        %419 = vmatprep.subr.mxu0 0.0
        %420 = vmatpush1.msra.mxu0 0.0
        %421 = vmatprep.subr.mxu0 0.0
        %422 = vmatpush1.msra.mxu0 0.0
        %423 = vmatprep.subr.mxu0 0.0
        %424 = vmatpush1.msra.mxu0 0.0
        %425 = vmatprep.subr.mxu0 0.0
        %426 = vmatpush1.msra.mxu0 0.0
        %427 = vmatprep.subr.mxu0 0.0
        %428 = vmatpush1.msra.mxu0 %v394
        %429 = vmatprep.subr.mxu0 0.0
        %430 = vmatpush1.msra.mxu0 %v393
        %431 = vmatprep.subr.mxu0 0.0
        %432 = vmatpush1.msra.mxu0 %v392
        %433 = vmatprep.subr.mxu0 0.0
        %434 = vmatpush1.msra.mxu0 %v391
        %435 = vmatprep.subr.mxu0 0.0
        %436 = vmatpush2.msra.mxu0 0.0
        %437 = vmatprep.subr.mxu0 0.0
        %438 = vmatpush2.msra.mxu0 0.0
        %439 = vmatprep.subr.mxu0 0.0
        %440 = vmatpush2.msra.mxu0 0.0
        %441 = vmatprep.subr.mxu0 0.0
        %442 = vmatpush2.msra.mxu0 0.0
        %443 = vmatprep.subr.mxu0 0.0
        %444 = vmatpush2.msra.mxu0 0.0
        %445 = vmatprep.subr.mxu0 0.0
        %446 = vmatpush2.msra.mxu0 0.0
        %447 = vmatprep.subr.mxu0 0.0
        %448 = vmatpush2.msra.mxu0 0.0
        %449 = vmatprep.subr.mxu0 0.0
        %450 = vmatpush2.msra.mxu0 0.0
        %451 = vmatprep.subr.mxu0 0.0
        %452 = vmatpush2.msra.mxu0 0.0
        %453 = vmatprep.subr.mxu0 0.0
        %454 = vmatpush2.msra.mxu0 0.0
        %455 = vmatprep.subr.mxu0 0.0
        %456 = vmatpush2.msra.mxu0 0.0
        %457 = vmatprep.subr.mxu0 0.0
        %458 = vmatpush2.msra.mxu0 0.0
        %459 = vmatprep.subr.mxu0 0.0
        %460 = vmatpush2.msra.mxu0 0.0
        %461 = vmatprep.subr.mxu0 0.0
        %462 = vmatpush2.msra.mxu0 0.0
        %463 = vmatprep.subr.mxu0 0.0
        %464 = vmatpush2.msra.mxu0 0.0
        %465 = vmatprep.subr.mxu0 0.0
        %466 = vmatpush2.msra.mxu0 0.0
        %467 = vmatprep.mubr.f32.mxu0 0.0
        %468 = vmatmul.mubr.f32.gmra.mxu0 %v232
        %v469 = vpop.f32.mrf.mxu0
        %v470 = vadd.f32 %v401, %v469
        %v471 = vpop.f32.mrf.mxu0
        %472 = vdwg.mxu0
        %s473 = scalar_lea.vmem %s217, 16 [#allocation7]
        %474 = vst.msk [vmem:[%s473] sm:$0xff] %vm230, %v470
        %s475 = sand.u32 %s113, 1
        %s476 = scalar_lea.sflag [#allocation4], %s475
        %s477 = sand.u32 %s113, 1
        %s478 = smul.addr %s477, 24
        %s479 = scalar_lea.vmem [#allocation7], %s478
        // Predicated region
        $region41: #{output_decoders.1} parent=31 // pred_check
          %p480 = pneg %p123
        $region42: #{output_decoders.1} parent=31 // pred_check_branch
          %482 = sbr.rel (%p480) target = $region44
        $region43: #{output_decoders.1} parent=31 // pred_region
          %s484 = ssub.s32 384, 384
          %485 = vsyncadd %s476, %s484
          %s486 = smul.addr %s25, 3
          %s487 = sadd.s32 %s26, %s486
          %s488 = smul.addr %s487, 128
          %s489 = scalar_lea.hbm %s3, %s488
          %s490 = sshll.u32 %s479, 4
          %s491 = int_to_ptr.vmem [resolvable:$true] %s490
          %496 = dma.vmem_to_hbm [thread:$0]  %s491, 384, %s489, %s476, 128, 128, 8
        $region44: #{output_decoders.1} parent=31 // pred_fallthru
          _
      $region32: #{output_decoders.1} parent=5 // pred_fallthru
        _
      %p497 = scmp.le.s32.totalorder 2, %s16
      // Predicated region
      $region45: #{output_decoders.1} parent=5 // pred_check
        %p498 = pneg %p497
      $region46: #{output_decoders.1} parent=5 // pred_check_branch
        %500 = sbr.rel (%p498) target = $region48
      $region47: #{output_decoders.1} parent=5 // pred_region
        %s501 = ssub.s32 %s16, 2
        // Predicated region
        $region49: #{output_decoders.1} parent=47 // pred_check
          %p502 = pneg %p129
        $region50: #{output_decoders.1} parent=47 // pred_check_branch
          %504 = sbr.rel (%p502) target = $region52
        $region51: #{output_decoders.1} parent=47 // pred_region
          %s505 = sand.u32 %s114, 1
          %s506 = scalar_lea.sflag [#allocation4], %s505
          %s507 = sand.u32 %s114, 1
          %s508 = smul.addr %s507, 24
          %s509 = scalar_lea.vmem [#allocation7], %s508
          %510 = dma.done %s506, 384
        $region52: #{output_decoders.1} parent=47 // pred_fallthru
          _
      $region48: #{output_decoders.1} parent=5 // pred_fallthru
        _
    $region6: #{output_decoders.1} parent=1 // loop_footer
      %s20 = sadd.s32 1, %s16
    $region7: #{output_decoders.1} parent=1 // loop_footer_branch
      %15 = sbr.rel target = $region3
    $region8: #{output_decoders.1} parent=1 // loop_exit
      _
    %511 = vsyncpa [#allocation3], 1
    %s512 = scalar_lea.sflag [#allocation3], 1
    %513 = vsyncpa %s512, 1
    %514 = vsyncpa [#allocation6], 1
    %515 = vsyncpa [#allocation4], 1
    %s516 = scalar_lea.sflag [#allocation4], 1
    %517 = vsyncpa %s516, 1

</llo_original>
